<compile_context>
chip_gen: v6e
topology: v6e:2x2x1
jax: 0.10.0
libtpu: 0.0.40
codegen_flags: <defaults>
</compile_context>

<pallas_src>
import math
from functools import partial

import jax
import jax.numpy as jnp
from jax.experimental import pallas as pl
from jax.experimental.pallas import tpu as pltpu


# ----------------------------- Pallas kernels ------------------------------

def _mha_ln_kernel(*refs, H, scale, self_attn, has_bias, eps):
    """Fused multi-head attention + residual + LayerNorm for ONE batch element."""
    idx = 0
    xq_ref = refs[idx]; idx += 1
    if self_attn:
        xkv_ref = xq_ref
    else:
        xkv_ref = refs[idx]; idx += 1
    bias_ref = None
    if has_bias:
        bias_ref = refs[idx]; idx += 1
    (wqkv_ref, bqkv_ref, wo_ref, bo_ref, g_ref, be_ref, o_ref) = refs[idx:]

    xq = xq_ref[0]                                   # (Lq, D) f32
    D = xq.shape[-1]
    Dh = D // H

    wqkv = wqkv_ref[...]                             # (D, 3D) bf16
    bqkv = bqkv_ref[...]                             # (1, 3D) f32
    xq_b = xq.astype(jnp.bfloat16)

    if self_attn:
        # Single fused QKV matmul (N = 3D) — one MXU pass instead of three.
        qkv = jnp.dot(xq_b, wqkv, preferred_element_type=jnp.float32) + bqkv
        q = qkv[:, :D]
        k = qkv[:, D:2 * D]
        v = qkv[:, 2 * D:]
    else:
        xkv_b = xkv_ref[0].astype(jnp.bfloat16)      # (Lk, D)
        q = jnp.dot(xq_b, wqkv[:, :D],
                    preferred_element_type=jnp.float32) + bqkv[:, :D]
        kv = jnp.dot(xkv_b, wqkv[:, D:],
                     preferred_element_type=jnp.float32) + bqkv[:, D:]
        k = kv[:, :D]
        v = kv[:, D:]

    # Pre-scale q (Lq*D multiply) instead of scaling every (Lq, Lk) score matrix.
    q = q * scale

    bias = bias_ref[0] if has_bias else None         # (Lq, Lk) f32 additive

    heads = []
    for h in range(H):                               # statically unrolled head loop
        lo = h * Dh
        qh = q[:, lo:lo + Dh].astype(jnp.bfloat16)   # (Lq, Dh)
        kh = k[:, lo:lo + Dh].astype(jnp.bfloat16)   # (Lk, Dh)
        vh = v[:, lo:lo + Dh].astype(jnp.bfloat16)   # (Lk, Dh)
        s = jax.lax.dot_general(qh, kh, (((1,), (1,)), ((), ())),
                                preferred_element_type=jnp.float32)   # (Lq, Lk)
        if bias is not None:
            s = s + bias
        s = s - jnp.max(s, axis=-1, keepdims=True)
        p = jnp.exp(s)
        p = p * pl.reciprocal(jnp.sum(p, axis=-1, keepdims=True), approx=True)
        heads.append(jnp.dot(p.astype(jnp.bfloat16), vh,
                             preferred_element_type=jnp.float32))     # (Lq, Dh)
    attn = jnp.concatenate(heads, axis=-1)           # lane-dense (Lq, D)

    out = jnp.dot(attn.astype(jnp.bfloat16), wo_ref[...],
                  preferred_element_type=jnp.float32) + bo_ref[...]

    # residual add + LayerNorm epilogue (float32)
    y = xq + out
    mu = jnp.mean(y, axis=-1, keepdims=True)
    var = jnp.mean(jnp.square(y - mu), axis=-1, keepdims=True)
    o_ref[0] = (y - mu) * jax.lax.rsqrt(var + eps) * g_ref[...] + be_ref[...]


def _ffn_ln_kernel(x_ref, w1_ref, b1_ref, w2_ref, b2_ref, g_ref, be_ref, o_ref, *, eps):
    """Fused feed-forward (W1 -> ReLU -> W2) + residual + LayerNorm for one M-tile."""
    x = x_ref[...]                                   # (tm, D) f32
    h = jnp.dot(x.astype(jnp.bfloat16), w1_ref[...],
                preferred_element_type=jnp.float32) + b1_ref[...]
    h = jnp.maximum(h, 0.0)                          # ReLU rides the VPU slot
    f = jnp.dot(h.astype(jnp.bfloat16), w2_ref[...],
                preferred_element_type=jnp.float32) + b2_ref[...]
    y = x + f
    mu = jnp.mean(y, axis=-1, keepdims=True)
    var = jnp.mean(jnp.square(y - mu), axis=-1, keepdims=True)
    o_ref[...] = (y - mu) * jax.lax.rsqrt(var + eps) * g_ref[...] + be_ref[...]


def _ln_kernel(x_ref, g_ref, b_ref, o_ref, *, eps):
    x = x_ref[...]
    mu = jnp.mean(x, axis=-1, keepdims=True)
    var = jnp.mean(jnp.square(x - mu), axis=-1, keepdims=True)
    o_ref[...] = (x - mu) * jax.lax.rsqrt(var + eps) * g_ref[...] + b_ref[...]


# ------------------------------- wrappers -----------------------------------

def _m_tile(M):
    for t in (512, 256, 128):
        if M % t == 0:
            return t
    return M   # small / irregular M: one full block


def pallas_mha_add_ln(x_q, x_kv, p, ln_g, ln_b, H, *, bias=None,
                      per_batch_bias=False, self_attn=False, eps=1e-5):
    B, Lq, D = x_q.shape
    Lk = x_kv.shape[1]
    scale = 1.0 / math.sqrt(D // H)
    has_bias = bias is not None

    inputs = [x_q]
    in_specs = [pl.BlockSpec((1, Lq, D), lambda b: (b, 0, 0))]
    if not self_attn:
        inputs.append(x_kv)
        in_specs.append(pl.BlockSpec((1, Lk, D), lambda b: (b, 0, 0)))
    if has_bias:
        inputs.append(bias)
        if per_batch_bias:
            in_specs.append(pl.BlockSpec((1, Lq, Lk), lambda b: (b, 0, 0)))
        else:
            in_specs.append(pl.BlockSpec((1, Lq, Lk), lambda b: (0, 0, 0)))
    inputs += [p["wqkv"], p["bqkv"], p["wo"], p["bo"], ln_g, ln_b]
    in_specs += [
        pl.BlockSpec((D, 3 * D), lambda b: (0, 0)),
        pl.BlockSpec((1, 3 * D), lambda b: (0, 0)),
        pl.BlockSpec((D, D), lambda b: (0, 0)),
        pl.BlockSpec((1, D), lambda b: (0, 0)),
        pl.BlockSpec((1, D), lambda b: (0, 0)),
        pl.BlockSpec((1, D), lambda b: (0, 0)),
    ]

    return pl.pallas_call(
        partial(_mha_ln_kernel, H=H, scale=scale, self_attn=self_attn,
                has_bias=has_bias, eps=eps),
        out_shape=jax.ShapeDtypeStruct((B, Lq, D), jnp.float32),
        grid=(B,),
        in_specs=in_specs,
        out_specs=pl.BlockSpec((1, Lq, D), lambda b: (b, 0, 0)),
        compiler_params=pltpu.CompilerParams(dimension_semantics=("parallel",)),
    )(*inputs)


def pallas_ffn_add_ln(x2d, p, ln_g, ln_b, eps=1e-5):
    M, D = x2d.shape
    dff = p["w1"].shape[1]
    tm = _m_tile(M)
    return pl.pallas_call(
        partial(_ffn_ln_kernel, eps=eps),
        out_shape=jax.ShapeDtypeStruct((M, D), jnp.float32),
        grid=(M // tm,),
        in_specs=[
            pl.BlockSpec((tm, D), lambda i: (i, 0)),
            pl.BlockSpec((D, dff), lambda i: (0, 0)),
            pl.BlockSpec((1, dff), lambda i: (0, 0)),
            pl.BlockSpec((dff, D), lambda i: (0, 0)),
            pl.BlockSpec((1, D), lambda i: (0, 0)),
            pl.BlockSpec((1, D), lambda i: (0, 0)),
            pl.BlockSpec((1, D), lambda i: (0, 0)),
        ],
        out_specs=pl.BlockSpec((tm, D), lambda i: (i, 0)),
        compiler_params=pltpu.CompilerParams(dimension_semantics=("parallel",)),
    )(x2d, p["w1"], p["b1"], p["w2"], p["b2"], ln_g, ln_b)


def pallas_layernorm(x2d, g, b, eps=1e-5):
    M, D = x2d.shape
    tm = _m_tile(M)
    return pl.pallas_call(
        partial(_ln_kernel, eps=eps),
        out_shape=jax.ShapeDtypeStruct((M, D), jnp.float32),
        grid=(M // tm,),
        in_specs=[
            pl.BlockSpec((tm, D), lambda i: (i, 0)),
            pl.BlockSpec((1, D), lambda i: (0, 0)),
            pl.BlockSpec((1, D), lambda i: (0, 0)),
        ],
        out_specs=pl.BlockSpec((tm, D), lambda i: (i, 0)),
        compiler_params=pltpu.CompilerParams(dimension_semantics=("parallel",)),
    )(x2d, g, b)


# ------------------------------ model pieces -------------------------------

def build_attn_bias(attn_mask, key_padding_mask, Lq, Lk, B):
    """Return (bias, per_batch) or (None, False) when no mask exists (no HBM traffic)."""
    if attn_mask is None and key_padding_mask is None:
        return None, False
    if key_padding_mask is not None:                   # bool (B, Lk), True = pad
        # Note: fully masked rows yield a uniform distribution (not NaN like -inf).
        bias = jnp.where(key_padding_mask[:, None, :],
                         jnp.float32(-1e30), jnp.float32(0.0))
        bias = jnp.broadcast_to(bias, (B, Lq, Lk))
        if attn_mask is not None:
            bias = bias + attn_mask[None, :, :].astype(jnp.float32)
        return bias, True
    return attn_mask.astype(jnp.float32)[None, :, :], False   # shared over batch


def encoder_layer(x, p, H, self_bias, per_batch):
    B, S, D = x.shape
    x2 = pallas_mha_add_ln(x, x, p["self_attn"], p["ln1_g"], p["ln1_b"], H,
                           bias=self_bias, per_batch_bias=per_batch, self_attn=True)
    x3 = pallas_ffn_add_ln(x2.reshape(B * S, D), p, p["ln2_g"], p["ln2_b"])
    return x3.reshape(B, S, D)


def decoder_layer(y, memory, p, H, self_bias, per_batch):
    B, T, D = y.shape
    y2 = pallas_mha_add_ln(y, y, p["self_attn"], p["ln1_g"], p["ln1_b"], H,
                           bias=self_bias, per_batch_bias=per_batch, self_attn=True)
    # memory_key_padding_mask is not exposed by this module's forward -> no bias tensor.
    y3 = pallas_mha_add_ln(y2, memory, p["cross_attn"], p["ln2_g"], p["ln2_b"], H,
                           bias=None, self_attn=False)
    y4 = pallas_ffn_add_ln(y3.reshape(B * T, D), p, p["ln3_g"], p["ln3_b"])
    return y4.reshape(B, T, D)


def animation_transformer_forward(params, src, tgt, tgt_mask=None,
                                  src_key_padding_mask=None,
                                  tgt_key_padding_mask=None):
    B, S, D = src.shape
    T = tgt.shape[1]
    H = params["num_heads"]

    # PositionalEncoding: pos_encoding has shape (max_len, 1, D); with batch_first
    # inputs the PyTorch code slices by BATCH index and broadcasts over the sequence
    # dim -- reproduce that exact (quirky) semantics.  Dropout is identity (eval).
    pe = params["pos_encoding"]                              # (max_len, D)
    src = src + pe[:B][:, None, :]
    tgt = tgt + pe[:B][:, None, :]

    src_bias, src_pb = build_attn_bias(None, src_key_padding_mask, S, S, B)
    tgt_bias, tgt_pb = build_attn_bias(tgt_mask, tgt_key_padding_mask, T, T, B)

    x = src
    for lp in params["encoder_layers"]:
        x = encoder_layer(x, lp, H, src_bias, src_pb)
    memory = pallas_layernorm(x.reshape(B * S, D),
                              params["enc_norm_g"], params["enc_norm_b"]).reshape(B, S, D)

    y = tgt
    for lp in params["decoder_layers"]:
        y = decoder_layer(y, memory, lp, H, tgt_bias, tgt_pb)
    out = pallas_layernorm(y.reshape(B * T, D),
                           params["dec_norm_g"], params["dec_norm_b"]).reshape(B, T, D)
    return out


# ---------------------------- parameter creation ---------------------------

def init_params(key, dim_model, num_heads, num_encoder_layers, num_decoder_layers,
                dim_feedforward=2048, max_len=64):
    D, dff = dim_model, dim_feedforward
    scale = 0.05
    keys = iter(jax.random.split(key, 256))

    def dense(shape):
        return jax.random.normal(next(keys), shape, jnp.float32) * scale

    def attn_params():
        wq, wk, wv = dense((D, D)), dense((D, D)), dense((D, D))
        return dict(
            wqkv=jnp.concatenate([wq, wk, wv], axis=1).astype(jnp.bfloat16),  # (D, 3D)
            bqkv=jnp.zeros((1, 3 * D), jnp.float32),
            wo=dense((D, D)).astype(jnp.bfloat16),
            bo=jnp.zeros((1, D), jnp.float32),
        )

    def ln():
        return jnp.ones((1, D), jnp.float32), jnp.zeros((1, D), jnp.float32)

    def enc_layer():
        g1, b1 = ln(); g2, b2 = ln()
        return dict(self_attn=attn_params(),
                    ln1_g=g1, ln1_b=b1,
                    w1=dense((D, dff)).astype(jnp.bfloat16),
                    b1=jnp.zeros((1, dff), jnp.float32),
                    w2=dense((dff, D)).astype(jnp.bfloat16),
                    b2=jnp.zeros((1, D), jnp.float32),
                    ln2_g=g2, ln2_b=b2)

    def dec_layer():
        g1, b1 = ln(); g2, b2 = ln(); g3, b3 = ln()
        return dict(self_attn=attn_params(), cross_attn=attn_params(),
                    ln1_g=g1, ln1_b=b1, ln2_g=g2, ln2_b=b2, ln3_g=g3, ln3_b=b3,
                    w1=dense((D, dff)).astype(jnp.bfloat16),
                    b1=jnp.zeros((1, dff), jnp.float32),
                    w2=dense((dff, D)).astype(jnp.bfloat16),
                    b2=jnp.zeros((1, D), jnp.float32))

    # sinusoidal positional-encoding table (same formula as the PyTorch module)
    position = jnp.arange(max_len, dtype=jnp.float32)[:, None]
    div_term = jnp.exp(jnp.arange(0, D, 2, dtype=jnp.float32) * (-math.log(10000.0) / D))
    pe = jnp.zeros((max_len, D), jnp.float32)
    pe = pe.at[:, 0::2].set(jnp.sin(position * div_term))
    pe = pe.at[:, 1::2].set(jnp.cos(position * div_term))

    eg, eb = jnp.ones((1, D), jnp.float32), jnp.zeros((1, D), jnp.float32)
    dg, db = jnp.ones((1, D), jnp.float32), jnp.zeros((1, D), jnp.float32)
    return dict(num_heads=num_heads,
                pos_encoding=pe,
                encoder_layers=[enc_layer() for _ in range(num_encoder_layers)],
                decoder_layers=[dec_layer() for _ in range(num_decoder_layers)],
                enc_norm_g=eg, enc_norm_b=eb,
                dec_norm_g=dg, dec_norm_b=db)


# ---------------------------------- main ------------------------------------

if __name__ == "__main__":
    B, S, T, D, H = 2, 8, 8, 32, 4
    n_enc, n_dec = 2, 2

    root = jax.random.PRNGKey(0)
    k_par, k_src, k_tgt = jax.random.split(root, 3)

    params = init_params(k_par, dim_model=D, num_heads=H,
                         num_encoder_layers=n_enc, num_decoder_layers=n_dec)

    src = jax.random.normal(k_src, (B, S, D), jnp.float32)
    tgt = jax.random.normal(k_tgt, (B, T, D), jnp.float32)

    # causal target mask, same as nn.Transformer.generate_square_subsequent_mask
    # (uses -1e30 instead of -inf to keep fully-masked rows finite)
    idx = jnp.arange(T)
    tgt_mask = jnp.where(idx[None, :] > idx[:, None], jnp.float32(-1e30), jnp.float32(0.0))

    # TODO(synk): nn.Dropout layers are treated as identity (eval-mode semantics).
    out = animation_transformer_forward(params, src, tgt, tgt_mask=tgt_mask,
                                        src_key_padding_mask=None,
                                        tgt_key_padding_mask=None)
    out = jax.block_until_ready(out)
    assert out.shape == (B, T, D) and bool(jnp.all(jnp.isfinite(out)))
    print("KERNEL_OK")
</pallas_src>

<mosaic_0001>
module attributes {stable_mosaic.version = 11 : i64} {
  func.func @_mha_ln_kernel(%arg0: i32, %arg1: memref<1x8x32xf32, #tpu.memory_space<vmem>>, %arg2: memref<32x96xbf16, #tpu.memory_space<vmem>>, %arg3: memref<1x96xf32, #tpu.memory_space<vmem>>, %arg4: memref<32x32xbf16, #tpu.memory_space<vmem>>, %arg5: memref<1x32xf32, #tpu.memory_space<vmem>>, %arg6: memref<1x32xf32, #tpu.memory_space<vmem>>, %arg7: memref<1x32xf32, #tpu.memory_space<vmem>>, %arg8: memref<1x8x32xf32, #tpu.memory_space<vmem>>) attributes {dimension_semantics = [#tpu.dimension_semantics<parallel>], iteration_bounds = array<i64: 2>, scalar_prefetch = 0 : i64, scratch_operands = 0 : i64, tpu.core_type = #tpu.core_type<tc>, window_params = [{transform_indices = @transform_0, window_bounds = array<i64: 1, 8, 32>}, {pipeline_mode = #tpu.pipeline_mode<synchronous>, transform_indices = @transform_1, window_bounds = array<i64: 32, 96>}, {pipeline_mode = #tpu.pipeline_mode<synchronous>, transform_indices = @transform_2, window_bounds = array<i64: 1, 96>}, {pipeline_mode = #tpu.pipeline_mode<synchronous>, transform_indices = @transform_3, window_bounds = array<i64: 32, 32>}, {pipeline_mode = #tpu.pipeline_mode<synchronous>, transform_indices = @transform_4, window_bounds = array<i64: 1, 32>}, {pipeline_mode = #tpu.pipeline_mode<synchronous>, transform_indices = @transform_5, window_bounds = array<i64: 1, 32>}, {pipeline_mode = #tpu.pipeline_mode<synchronous>, transform_indices = @transform_6, window_bounds = array<i64: 1, 32>}, {transform_indices = @transform_7, window_bounds = array<i64: 1, 8, 32>}]} {
    %c0 = arith.constant 0 : index
    %c0_0 = arith.constant 0 : index
    %c0_1 = arith.constant 0 : index
    %0 = vector.load %arg1[%c0, %c0_0, %c0_1] : memref<1x8x32xf32, #tpu.memory_space<vmem>>, vector<1x8x32xf32>
    %1 = vector.shape_cast %0 : vector<1x8x32xf32> to vector<8x32xf32>
    %c0_2 = arith.constant 0 : index
    %c0_3 = arith.constant 0 : index
    %2 = vector.load %arg2[%c0_2, %c0_3] : memref<32x96xbf16, #tpu.memory_space<vmem>>, vector<32x96xbf16>
    %c0_4 = arith.constant 0 : index
    %c0_5 = arith.constant 0 : index
    %3 = vector.load %arg3[%c0_4, %c0_5] : memref<1x96xf32, #tpu.memory_space<vmem>>, vector<1x96xf32>
    %4 = arith.truncf %1 : vector<8x32xf32> to vector<8x32xbf16>
    %cst = arith.constant dense<0.000000e+00> : vector<8x96xf32>
    %5 = tpu.matmul %4, %2, %cst {dimension_numbers = #tpu.dot_dimension_numbers<[1], [0], [0], [1], [0, 0, 1, 1], [], []>} : vector<8x32xbf16>, vector<32x96xbf16>, vector<8x96xf32> -> vector<8x96xf32>
    %6 = vector.broadcast %3 : vector<1x96xf32> to vector<8x96xf32>
    %7 = arith.addf %5, %6 : vector<8x96xf32>
    %8 = vector.extract_strided_slice %7 {offsets = [0, 0], sizes = [8, 32], strides = [1, 1]} : vector<8x96xf32> to vector<8x32xf32>
    %9 = vector.extract_strided_slice %7 {offsets = [0, 32], sizes = [8, 32], strides = [1, 1]} : vector<8x96xf32> to vector<8x32xf32>
    %10 = vector.extract_strided_slice %7 {offsets = [0, 64], sizes = [8, 32], strides = [1, 1]} : vector<8x96xf32> to vector<8x32xf32>
    %cst_6 = arith.constant 0.353553385 : f32
    %11 = vector.broadcast %cst_6 : f32 to vector<8x32xf32>
    %12 = arith.mulf %8, %11 : vector<8x32xf32>
    %13 = vector.extract_strided_slice %12 {offsets = [0, 0], sizes = [8, 8], strides = [1, 1]} : vector<8x32xf32> to vector<8x8xf32>
    %14 = arith.truncf %13 : vector<8x8xf32> to vector<8x8xbf16>
    %15 = vector.extract_strided_slice %9 {offsets = [0, 0], sizes = [8, 8], strides = [1, 1]} : vector<8x32xf32> to vector<8x8xf32>
    %16 = arith.truncf %15 : vector<8x8xf32> to vector<8x8xbf16>
    %17 = vector.extract_strided_slice %10 {offsets = [0, 0], sizes = [8, 8], strides = [1, 1]} : vector<8x32xf32> to vector<8x8xf32>
    %18 = arith.truncf %17 : vector<8x8xf32> to vector<8x8xbf16>
    %cst_7 = arith.constant dense<0.000000e+00> : vector<8x8xf32>
    %19 = tpu.matmul %14, %16, %cst_7 {dimension_numbers = #tpu.dot_dimension_numbers<[1], [1], [0], [0], [0, 0, 1, 0], [], []>} : vector<8x8xbf16>, vector<8x8xbf16>, vector<8x8xf32> -> vector<8x8xf32>
    %cst_8 = arith.constant dense<0xFF800000> : vector<8xf32>
    %20 = vector.multi_reduction <maximumf>, %19, %cst_8 [1] : vector<8x8xf32> to vector<8xf32>
    %21 = vector.shape_cast %20 : vector<8xf32> to vector<8x1xf32>
    %22 = vector.broadcast %21 : vector<8x1xf32> to vector<8x8xf32>
    %23 = arith.subf %19, %22 : vector<8x8xf32>
    %24 = math.exp %23 : vector<8x8xf32>
    %cst_9 = arith.constant dense<0.000000e+00> : vector<8xf32>
    %25 = vector.multi_reduction <add>, %24, %cst_9 [1] : vector<8x8xf32> to vector<8xf32>
    %26 = vector.shape_cast %25 : vector<8xf32> to vector<8x1xf32>
    %27 = tpu.reciprocal %26 {approx = true} : vector<8x1xf32> -> vector<8x1xf32>
    %28 = vector.broadcast %27 : vector<8x1xf32> to vector<8x8xf32>
    %29 = arith.mulf %24, %28 : vector<8x8xf32>
    %30 = arith.truncf %29 : vector<8x8xf32> to vector<8x8xbf16>
    %cst_10 = arith.constant dense<0.000000e+00> : vector<8x8xf32>
    %31 = tpu.matmul %30, %18, %cst_10 {dimension_numbers = #tpu.dot_dimension_numbers<[1], [0], [0], [1], [0, 0, 1, 1], [], []>} : vector<8x8xbf16>, vector<8x8xbf16>, vector<8x8xf32> -> vector<8x8xf32>
    %32 = vector.extract_strided_slice %12 {offsets = [0, 8], sizes = [8, 8], strides = [1, 1]} : vector<8x32xf32> to vector<8x8xf32>
    %33 = arith.truncf %32 : vector<8x8xf32> to vector<8x8xbf16>
    %34 = vector.extract_strided_slice %9 {offsets = [0, 8], sizes = [8, 8], strides = [1, 1]} : vector<8x32xf32> to vector<8x8xf32>
    %35 = arith.truncf %34 : vector<8x8xf32> to vector<8x8xbf16>
    %36 = vector.extract_strided_slice %10 {offsets = [0, 8], sizes = [8, 8], strides = [1, 1]} : vector<8x32xf32> to vector<8x8xf32>
    %37 = arith.truncf %36 : vector<8x8xf32> to vector<8x8xbf16>
    %cst_11 = arith.constant dense<0.000000e+00> : vector<8x8xf32>
    %38 = tpu.matmul %33, %35, %cst_11 {dimension_numbers = #tpu.dot_dimension_numbers<[1], [1], [0], [0], [0, 0, 1, 0], [], []>} : vector<8x8xbf16>, vector<8x8xbf16>, vector<8x8xf32> -> vector<8x8xf32>
    %cst_12 = arith.constant dense<0xFF800000> : vector<8xf32>
    %39 = vector.multi_reduction <maximumf>, %38, %cst_12 [1] : vector<8x8xf32> to vector<8xf32>
    %40 = vector.shape_cast %39 : vector<8xf32> to vector<8x1xf32>
    %41 = vector.broadcast %40 : vector<8x1xf32> to vector<8x8xf32>
    %42 = arith.subf %38, %41 : vector<8x8xf32>
    %43 = math.exp %42 : vector<8x8xf32>
    %cst_13 = arith.constant dense<0.000000e+00> : vector<8xf32>
    %44 = vector.multi_reduction <add>, %43, %cst_13 [1] : vector<8x8xf32> to vector<8xf32>
    %45 = vector.shape_cast %44 : vector<8xf32> to vector<8x1xf32>
    %46 = tpu.reciprocal %45 {approx = true} : vector<8x1xf32> -> vector<8x1xf32>
    %47 = vector.broadcast %46 : vector<8x1xf32> to vector<8x8xf32>
    %48 = arith.mulf %43, %47 : vector<8x8xf32>
    %49 = arith.truncf %48 : vector<8x8xf32> to vector<8x8xbf16>
    %cst_14 = arith.constant dense<0.000000e+00> : vector<8x8xf32>
    %50 = tpu.matmul %49, %37, %cst_14 {dimension_numbers = #tpu.dot_dimension_numbers<[1], [0], [0], [1], [0, 0, 1, 1], [], []>} : vector<8x8xbf16>, vector<8x8xbf16>, vector<8x8xf32> -> vector<8x8xf32>
    %51 = vector.extract_strided_slice %12 {offsets = [0, 16], sizes = [8, 8], strides = [1, 1]} : vector<8x32xf32> to vector<8x8xf32>
    %52 = arith.truncf %51 : vector<8x8xf32> to vector<8x8xbf16>
    %53 = vector.extract_strided_slice %9 {offsets = [0, 16], sizes = [8, 8], strides = [1, 1]} : vector<8x32xf32> to vector<8x8xf32>
    %54 = arith.truncf %53 : vector<8x8xf32> to vector<8x8xbf16>
    %55 = vector.extract_strided_slice %10 {offsets = [0, 16], sizes = [8, 8], strides = [1, 1]} : vector<8x32xf32> to vector<8x8xf32>
    %56 = arith.truncf %55 : vector<8x8xf32> to vector<8x8xbf16>
    %cst_15 = arith.constant dense<0.000000e+00> : vector<8x8xf32>
    %57 = tpu.matmul %52, %54, %cst_15 {dimension_numbers = #tpu.dot_dimension_numbers<[1], [1], [0], [0], [0, 0, 1, 0], [], []>} : vector<8x8xbf16>, vector<8x8xbf16>, vector<8x8xf32> -> vector<8x8xf32>
    %cst_16 = arith.constant dense<0xFF800000> : vector<8xf32>
    %58 = vector.multi_reduction <maximumf>, %57, %cst_16 [1] : vector<8x8xf32> to vector<8xf32>
    %59 = vector.shape_cast %58 : vector<8xf32> to vector<8x1xf32>
    %60 = vector.broadcast %59 : vector<8x1xf32> to vector<8x8xf32>
    %61 = arith.subf %57, %60 : vector<8x8xf32>
    %62 = math.exp %61 : vector<8x8xf32>
    %cst_17 = arith.constant dense<0.000000e+00> : vector<8xf32>
    %63 = vector.multi_reduction <add>, %62, %cst_17 [1] : vector<8x8xf32> to vector<8xf32>
    %64 = vector.shape_cast %63 : vector<8xf32> to vector<8x1xf32>
    %65 = tpu.reciprocal %64 {approx = true} : vector<8x1xf32> -> vector<8x1xf32>
    %66 = vector.broadcast %65 : vector<8x1xf32> to vector<8x8xf32>
    %67 = arith.mulf %62, %66 : vector<8x8xf32>
    %68 = arith.truncf %67 : vector<8x8xf32> to vector<8x8xbf16>
    %cst_18 = arith.constant dense<0.000000e+00> : vector<8x8xf32>
    %69 = tpu.matmul %68, %56, %cst_18 {dimension_numbers = #tpu.dot_dimension_numbers<[1], [0], [0], [1], [0, 0, 1, 1], [], []>} : vector<8x8xbf16>, vector<8x8xbf16>, vector<8x8xf32> -> vector<8x8xf32>
    %70 = vector.extract_strided_slice %12 {offsets = [0, 24], sizes = [8, 8], strides = [1, 1]} : vector<8x32xf32> to vector<8x8xf32>
    %71 = arith.truncf %70 : vector<8x8xf32> to vector<8x8xbf16>
    %72 = vector.extract_strided_slice %9 {offsets = [0, 24], sizes = [8, 8], strides = [1, 1]} : vector<8x32xf32> to vector<8x8xf32>
    %73 = arith.truncf %72 : vector<8x8xf32> to vector<8x8xbf16>
    %74 = vector.extract_strided_slice %10 {offsets = [0, 24], sizes = [8, 8], strides = [1, 1]} : vector<8x32xf32> to vector<8x8xf32>
    %75 = arith.truncf %74 : vector<8x8xf32> to vector<8x8xbf16>
    %cst_19 = arith.constant dense<0.000000e+00> : vector<8x8xf32>
    %76 = tpu.matmul %71, %73, %cst_19 {dimension_numbers = #tpu.dot_dimension_numbers<[1], [1], [0], [0], [0, 0, 1, 0], [], []>} : vector<8x8xbf16>, vector<8x8xbf16>, vector<8x8xf32> -> vector<8x8xf32>
    %cst_20 = arith.constant dense<0xFF800000> : vector<8xf32>
    %77 = vector.multi_reduction <maximumf>, %76, %cst_20 [1] : vector<8x8xf32> to vector<8xf32>
    %78 = vector.shape_cast %77 : vector<8xf32> to vector<8x1xf32>
    %79 = vector.broadcast %78 : vector<8x1xf32> to vector<8x8xf32>
    %80 = arith.subf %76, %79 : vector<8x8xf32>
    %81 = math.exp %80 : vector<8x8xf32>
    %cst_21 = arith.constant dense<0.000000e+00> : vector<8xf32>
    %82 = vector.multi_reduction <add>, %81, %cst_21 [1] : vector<8x8xf32> to vector<8xf32>
    %83 = vector.shape_cast %82 : vector<8xf32> to vector<8x1xf32>
    %84 = tpu.reciprocal %83 {approx = true} : vector<8x1xf32> -> vector<8x1xf32>
    %85 = vector.broadcast %84 : vector<8x1xf32> to vector<8x8xf32>
    %86 = arith.mulf %81, %85 : vector<8x8xf32>
    %87 = arith.truncf %86 : vector<8x8xf32> to vector<8x8xbf16>
    %cst_22 = arith.constant dense<0.000000e+00> : vector<8x8xf32>
    %88 = tpu.matmul %87, %75, %cst_22 {dimension_numbers = #tpu.dot_dimension_numbers<[1], [0], [0], [1], [0, 0, 1, 1], [], []>} : vector<8x8xbf16>, vector<8x8xbf16>, vector<8x8xf32> -> vector<8x8xf32>
    %89 = tpu.concatenate %31, %50, %69, %88 in 1 : vector<8x8xf32>, vector<8x8xf32>, vector<8x8xf32>, vector<8x8xf32> -> vector<8x32xf32>
    %90 = arith.truncf %89 : vector<8x32xf32> to vector<8x32xbf16>
    %c0_23 = arith.constant 0 : index
    %c0_24 = arith.constant 0 : index
    %91 = vector.load %arg4[%c0_23, %c0_24] : memref<32x32xbf16, #tpu.memory_space<vmem>>, vector<32x32xbf16>
    %cst_25 = arith.constant dense<0.000000e+00> : vector<8x32xf32>
    %92 = tpu.matmul %90, %91, %cst_25 {dimension_numbers = #tpu.dot_dimension_numbers<[1], [0], [0], [1], [0, 0, 1, 1], [], []>} : vector<8x32xbf16>, vector<32x32xbf16>, vector<8x32xf32> -> vector<8x32xf32>
    %c0_26 = arith.constant 0 : index
    %c0_27 = arith.constant 0 : index
    %93 = vector.load %arg5[%c0_26, %c0_27] : memref<1x32xf32, #tpu.memory_space<vmem>>, vector<1x32xf32>
    %94 = vector.broadcast %93 : vector<1x32xf32> to vector<8x32xf32>
    %95 = arith.addf %92, %94 : vector<8x32xf32>
    %96 = arith.addf %1, %95 : vector<8x32xf32>
    %cst_28 = arith.constant dense<0.000000e+00> : vector<8xf32>
    %97 = vector.multi_reduction <add>, %96, %cst_28 [1] : vector<8x32xf32> to vector<8xf32>
    %98 = vector.shape_cast %97 : vector<8xf32> to vector<8x1xf32>
    %cst_29 = arith.constant 3.200000e+01 : f32
    %99 = vector.broadcast %cst_29 : f32 to vector<8x1xf32>
    %100 = arith.divf %98, %99 : vector<8x1xf32>
    %101 = vector.broadcast %100 : vector<8x1xf32> to vector<8x32xf32>
    %102 = arith.subf %96, %101 : vector<8x32xf32>
    %103 = arith.mulf %102, %102 : vector<8x32xf32>
    %cst_30 = arith.constant dense<0.000000e+00> : vector<8xf32>
    %104 = vector.multi_reduction <add>, %103, %cst_30 [1] : vector<8x32xf32> to vector<8xf32>
    %105 = vector.shape_cast %104 : vector<8xf32> to vector<8x1xf32>
    %cst_31 = arith.constant 3.200000e+01 : f32
    %106 = vector.broadcast %cst_31 : f32 to vector<8x1xf32>
    %107 = arith.divf %105, %106 : vector<8x1xf32>
    %108 = vector.broadcast %100 : vector<8x1xf32> to vector<8x32xf32>
    %109 = arith.subf %96, %108 : vector<8x32xf32>
    %cst_32 = arith.constant 9.99999974E-6 : f32
    %110 = vector.broadcast %cst_32 : f32 to vector<8x1xf32>
    %111 = arith.addf %107, %110 : vector<8x1xf32>
    %112 = math.rsqrt %111 : vector<8x1xf32>
    %113 = vector.broadcast %112 : vector<8x1xf32> to vector<8x32xf32>
    %114 = arith.mulf %109, %113 : vector<8x32xf32>
    %c0_33 = arith.constant 0 : index
    %c0_34 = arith.constant 0 : index
    %115 = vector.load %arg6[%c0_33, %c0_34] : memref<1x32xf32, #tpu.memory_space<vmem>>, vector<1x32xf32>
    %116 = vector.broadcast %115 : vector<1x32xf32> to vector<8x32xf32>
    %117 = arith.mulf %114, %116 : vector<8x32xf32>
    %c0_35 = arith.constant 0 : index
    %c0_36 = arith.constant 0 : index
    %118 = vector.load %arg7[%c0_35, %c0_36] : memref<1x32xf32, #tpu.memory_space<vmem>>, vector<1x32xf32>
    %119 = vector.broadcast %118 : vector<1x32xf32> to vector<8x32xf32>
    %120 = arith.addf %117, %119 : vector<8x32xf32>
    %c0_37 = arith.constant 0 : index
    %c0_38 = arith.constant 0 : index
    %c0_39 = arith.constant 0 : index
    %121 = vector.load %arg8[%c0_37, %c0_38, %c0_39] : memref<1x8x32xf32, #tpu.memory_space<vmem>>, vector<1x8x32xf32>
    %122 = vector.shape_cast %121 : vector<1x8x32xf32> to vector<8x32xf32>
    %123 = vector.shape_cast %120 : vector<8x32xf32> to vector<1x8x32xf32>
    tpu.vector_store %arg8[%c0_37, %c0_38, %c0_39], %123 {strides = array<i32>} : memref<1x8x32xf32, #tpu.memory_space<vmem>>, vector<1x8x32xf32>,
    return
  }
  func.func @transform_0(%arg0: i32) -> (i32, i32, i32) {
    %c0_i32 = arith.constant 0 : i32
    %c0_i32_0 = arith.constant 0 : i32
    %c0_i32_1 = arith.constant 0 : i32
    return %arg0, %c0_i32, %c0_i32_0 : i32, i32, i32
  }
  func.func @transform_1(%arg0: i32) -> (i32, i32) {
    %c0_i32 = arith.constant 0 : i32
    %c0_i32_0 = arith.constant 0 : i32
    %c0_i32_1 = arith.constant 0 : i32
    return %c0_i32, %c0_i32_0 : i32, i32
  }
  func.func @transform_2(%arg0: i32) -> (i32, i32) {
    %c0_i32 = arith.constant 0 : i32
    %c0_i32_0 = arith.constant 0 : i32
    %c0_i32_1 = arith.constant 0 : i32
    return %c0_i32, %c0_i32_0 : i32, i32
  }
  func.func @transform_3(%arg0: i32) -> (i32, i32) {
    %c0_i32 = arith.constant 0 : i32
    %c0_i32_0 = arith.constant 0 : i32
    %c0_i32_1 = arith.constant 0 : i32
    return %c0_i32, %c0_i32_0 : i32, i32
  }
  func.func @transform_4(%arg0: i32) -> (i32, i32) {
    %c0_i32 = arith.constant 0 : i32
    %c0_i32_0 = arith.constant 0 : i32
    %c0_i32_1 = arith.constant 0 : i32
    return %c0_i32, %c0_i32_0 : i32, i32
  }
  func.func @transform_5(%arg0: i32) -> (i32, i32) {
    %c0_i32 = arith.constant 0 : i32
    %c0_i32_0 = arith.constant 0 : i32
    %c0_i32_1 = arith.constant 0 : i32
    return %c0_i32, %c0_i32_0 : i32, i32
  }
  func.func @transform_6(%arg0: i32) -> (i32, i32) {
    %c0_i32 = arith.constant 0 : i32
    %c0_i32_0 = arith.constant 0 : i32
    %c0_i32_1 = arith.constant 0 : i32
    return %c0_i32, %c0_i32_0 : i32, i32
  }
  func.func @transform_7(%arg0: i32) -> (i32, i32, i32) {
    %c0_i32 = arith.constant 0 : i32
    %c0_i32_0 = arith.constant 0 : i32
    %c0_i32_1 = arith.constant 0 : i32
    return %arg0, %c0_i32, %c0_i32_0 : i32, i32, i32
  }
}

</mosaic_0001>

<llo_original>
// kernel: tpu_custom_call.1
$region0: #{tpu_custom_call.1}
  #allocation0 [shape = 'u32[]', space=smem, size = 0x4, offset = 0x4, fixed_abs, tag = 'smem constant byte address 0x4 - core index']
  #allocation1 [shape = 'u32[144,128]{1,0:T(1,128)}', space=vmem, size = 0x12000, scoped, tag = 'internal scratch']
  %s0 = inlined_call_operand.hbm [shape: f32[2,8,32], index: 0, kind: input, shape index: {}]
  %s1 = inlined_call_operand.hbm [shape: bf16[32,96], index: 1, kind: input, shape index: {}]
  %s2 = inlined_call_operand.vmem [shape: f32[1,96], index: 2, kind: input, shape index: {}]
  %s3 = inlined_call_operand.hbm [shape: bf16[32,32], index: 3, kind: input, shape index: {}]
  %s4 = inlined_call_operand.vmem [shape: f32[1,32], index: 4, kind: input, shape index: {}]
  %s5 = inlined_call_operand.vmem [shape: f32[1,32], index: 5, kind: input, shape index: {}]
  %s6 = inlined_call_operand.vmem [shape: f32[1,32], index: 6, kind: input, shape index: {}]
  %s7 = inlined_call_operand.hbm [shape: f32[2,8,32], index: 7, kind: output, shape index: {}]
  %s8 = sld [smem:[#allocation0]]
  $region73: #{tpu_custom_call.1} parent=0
    _
  %s10 = ssub.s32 1, %s8
  %s11 = scalar_select 0, %s10, %s8
  $region1: #{tpu_custom_call.1} parent=0
    #allocation2 [shape = 'u8[8192]{0}', space=vmem, size = 0x2000, scoped, tag = 'input window, operand 0']
    #allocation3 [shape = 's32[2]{0}', space=sflag, size = 0x8, scoped, tag = 'scoped memory for tpu_custom_call.1']
    #allocation4 [shape = 's32[2]{0}', space=sflag, size = 0x8, scoped, tag = 'scoped memory for tpu_custom_call.1']
    #allocation5 [shape = 'u8[8192]{0}', space=vmem, size = 0x2000, scoped, tag = 'input window, operand 1, single buffered']
    #allocation6 [shape = 's32[1]{0}', space=sflag, size = 0x4, scoped, tag = 'scoped memory for tpu_custom_call.1']
    #allocation7 [shape = 'u8[8192]{0}', space=vmem, size = 0x2000, scoped, tag = 'input window, operand 3, single buffered']
    #allocation8 [shape = 'u8[8192]{0}', space=vmem, size = 0x2000, scoped, tag = 'output window, operand 0']
    %12 = vsyncpa [#allocation3], 0
    %s13 = scalar_lea.sflag [#allocation3], 1
    %14 = vsyncpa %s13, 0
    %15 = vsyncpa [#allocation6], 0
    %16 = vsyncpa [#allocation4], 0
    %s17 = scalar_lea.sflag [#allocation4], 1
    %18 = vsyncpa %s17, 0
    loop: start=0, step=1, limit=4
    $region2: #{tpu_custom_call.1} parent=1 // loop_pre_header
      _
    $region3: #{tpu_custom_call.1} parent=1 // loop_header
      %s20 = sphi 0, %s24
      %p21 = scmp.ge.s32.totalorder %s20, 4
      %s30 = sphi 0, %s32
      %s33 = sphi 0, %s30
      %s34 = sphi 0, %s33
      %s50 = sphi 0, %s34
      %s54 = sphi 0, %s54
      %s56 = sphi 0, %s54
      %s57 = sphi 0, %s56
      %s71 = sphi 0, %s57
      %s75 = sphi 0, %s75
      %s77 = sphi 0, %s75
      %s78 = sphi 0, %s77
      %s92 = sphi 0, %s78
      %s96 = sphi 0, %s96
      %s98 = sphi 0, %s96
      %s99 = sphi 0, %s98
      %s113 = sphi 0, %s99
      %s117 = sphi 0, %s117
      %s119 = sphi 0, %s117
      %s120 = sphi 0, %s119
      %s134 = sphi 0, %s120
      %s138 = sphi 0, %s138
      %s140 = sphi 0, %s138
      %s141 = sphi 0, %s140
      %s155 = sphi 0, %s141
      %s159 = sphi 0, %s159
      %s161 = sphi 0, %s159
      %s162 = sphi 0, %s161
      %s176 = sphi 0, %s162
      %s182 = sphi 0, %s184
      %s185 = sphi 0, %s182
      %s186 = sphi 0, %s185
      %s202 = sphi 0, %s186
    $region4: #{tpu_custom_call.1} parent=1 // loop_header_branch
      %23 = sbr.rel (%p21) target = $region8
    $region5: #{tpu_custom_call.1} parent=1 // loop_body
      %s25 = ssub.s32 %s20, 1
      %s26 = ssub.s32 %s20, 2
      %s27 = sadd.s32 %s20, 1
      %s28 = ssub.s32 %s20, %s27
      %p29 = scmp.eq.s32.totalorder %s28, 0
      %s31 = sadd.s32 %s30, 1
      %s32 = scalar_select %p29, %s30, %s31
      %p35 = pneg %p29
      %p36 = scmp.eq.s32.totalorder %s20, 1
      %p37 = por %p35, %p36
      %p38 = scmp.ne.s32.totalorder %s30, %s33
      %p39 = scmp.eq.s32.totalorder %s20, 0
      %p40 = por %p38, %p39
      %p41 = scmp.ne.s32.totalorder %s30, %s33
      %p42 = scmp.eq.s32.totalorder %s25, 1
      %p43 = por %p41, %p42
      %p44 = scmp.ne.s32.totalorder %s33, %s34
      %p45 = scmp.eq.s32.totalorder %s25, 0
      %p46 = por %p44, %p45
      %p47 = scmp.ne.s32.totalorder %s33, %s34
      %p48 = scmp.eq.s32.totalorder %s26, 1
      %p49 = por %p47, %p48
      %p51 = scmp.ne.s32.totalorder %s34, %s50
      %p52 = scmp.eq.s32.totalorder %s26, 0
      %p53 = por %p51, %p52
      %s55 = sadd.s32 %s54, 1
      %p58 = scmp.eq.s32.totalorder %s20, 1
      %p59 = scmp.ne.s32.totalorder %s54, %s56
      %p60 = scmp.eq.s32.totalorder %s20, 0
      %p61 = por %p59, %p60
      %p62 = scmp.ne.s32.totalorder %s54, %s56
      %p63 = scmp.eq.s32.totalorder %s25, 1
      %p64 = por %p62, %p63
      %p65 = scmp.ne.s32.totalorder %s56, %s57
      %p66 = scmp.eq.s32.totalorder %s25, 0
      %p67 = por %p65, %p66
      %p68 = scmp.ne.s32.totalorder %s56, %s57
      %p69 = scmp.eq.s32.totalorder %s26, 1
      %p70 = por %p68, %p69
      %p72 = scmp.ne.s32.totalorder %s57, %s71
      %p73 = scmp.eq.s32.totalorder %s26, 0
      %p74 = por %p72, %p73
      %s76 = sadd.s32 %s75, 1
      %p79 = scmp.eq.s32.totalorder %s20, 1
      %p80 = scmp.ne.s32.totalorder %s75, %s77
      %p81 = scmp.eq.s32.totalorder %s20, 0
      %p82 = por %p80, %p81
      %p83 = scmp.ne.s32.totalorder %s75, %s77
      %p84 = scmp.eq.s32.totalorder %s25, 1
      %p85 = por %p83, %p84
      %p86 = scmp.ne.s32.totalorder %s77, %s78
      %p87 = scmp.eq.s32.totalorder %s25, 0
      %p88 = por %p86, %p87
      %p89 = scmp.ne.s32.totalorder %s77, %s78
      %p90 = scmp.eq.s32.totalorder %s26, 1
      %p91 = por %p89, %p90
      %p93 = scmp.ne.s32.totalorder %s78, %s92
      %p94 = scmp.eq.s32.totalorder %s26, 0
      %p95 = por %p93, %p94
      %s97 = sadd.s32 %s96, 1
      %p100 = scmp.eq.s32.totalorder %s20, 1
      %p101 = scmp.ne.s32.totalorder %s96, %s98
      %p102 = scmp.eq.s32.totalorder %s20, 0
      %p103 = por %p101, %p102
      %p104 = scmp.ne.s32.totalorder %s96, %s98
      %p105 = scmp.eq.s32.totalorder %s25, 1
      %p106 = por %p104, %p105
      %p107 = scmp.ne.s32.totalorder %s98, %s99
      %p108 = scmp.eq.s32.totalorder %s25, 0
      %p109 = por %p107, %p108
      %p110 = scmp.ne.s32.totalorder %s98, %s99
      %p111 = scmp.eq.s32.totalorder %s26, 1
      %p112 = por %p110, %p111
      %p114 = scmp.ne.s32.totalorder %s99, %s113
      %p115 = scmp.eq.s32.totalorder %s26, 0
      %p116 = por %p114, %p115
      %s118 = sadd.s32 %s117, 1
      %p121 = scmp.eq.s32.totalorder %s20, 1
      %p122 = scmp.ne.s32.totalorder %s117, %s119
      %p123 = scmp.eq.s32.totalorder %s20, 0
      %p124 = por %p122, %p123
      %p125 = scmp.ne.s32.totalorder %s117, %s119
      %p126 = scmp.eq.s32.totalorder %s25, 1
      %p127 = por %p125, %p126
      %p128 = scmp.ne.s32.totalorder %s119, %s120
      %p129 = scmp.eq.s32.totalorder %s25, 0
      %p130 = por %p128, %p129
      %p131 = scmp.ne.s32.totalorder %s119, %s120
      %p132 = scmp.eq.s32.totalorder %s26, 1
      %p133 = por %p131, %p132
      %p135 = scmp.ne.s32.totalorder %s120, %s134
      %p136 = scmp.eq.s32.totalorder %s26, 0
      %p137 = por %p135, %p136
      %s139 = sadd.s32 %s138, 1
      %p142 = scmp.eq.s32.totalorder %s20, 1
      %p143 = scmp.ne.s32.totalorder %s138, %s140
      %p144 = scmp.eq.s32.totalorder %s20, 0
      %p145 = por %p143, %p144
      %p146 = scmp.ne.s32.totalorder %s138, %s140
      %p147 = scmp.eq.s32.totalorder %s25, 1
      %p148 = por %p146, %p147
      %p149 = scmp.ne.s32.totalorder %s140, %s141
      %p150 = scmp.eq.s32.totalorder %s25, 0
      %p151 = por %p149, %p150
      %p152 = scmp.ne.s32.totalorder %s140, %s141
      %p153 = scmp.eq.s32.totalorder %s26, 1
      %p154 = por %p152, %p153
      %p156 = scmp.ne.s32.totalorder %s141, %s155
      %p157 = scmp.eq.s32.totalorder %s26, 0
      %p158 = por %p156, %p157
      %s160 = sadd.s32 %s159, 1
      %p163 = scmp.eq.s32.totalorder %s20, 1
      %p164 = scmp.ne.s32.totalorder %s159, %s161
      %p165 = scmp.eq.s32.totalorder %s20, 0
      %p166 = por %p164, %p165
      %p167 = scmp.ne.s32.totalorder %s159, %s161
      %p168 = scmp.eq.s32.totalorder %s25, 1
      %p169 = por %p167, %p168
      %p170 = scmp.ne.s32.totalorder %s161, %s162
      %p171 = scmp.eq.s32.totalorder %s25, 0
      %p172 = por %p170, %p171
      %p173 = scmp.ne.s32.totalorder %s161, %s162
      %p174 = scmp.eq.s32.totalorder %s26, 1
      %p175 = por %p173, %p174
      %p177 = scmp.ne.s32.totalorder %s162, %s176
      %p178 = scmp.eq.s32.totalorder %s26, 0
      %p179 = por %p177, %p178
      %s180 = ssub.s32 %s20, %s27
      %p181 = scmp.eq.s32.totalorder %s180, 0
      %s183 = sadd.s32 %s182, 1
      %s184 = scalar_select %p181, %s182, %s183
      %p187 = pneg %p181
      %p188 = scmp.eq.s32.totalorder %s20, 1
      %p189 = por %p187, %p188
      %p190 = scmp.ne.s32.totalorder %s182, %s185
      %p191 = scmp.eq.s32.totalorder %s20, 0
      %p192 = por %p190, %p191
      %p193 = scmp.ne.s32.totalorder %s182, %s185
      %p194 = scmp.eq.s32.totalorder %s25, 1
      %p195 = por %p193, %p194
      %p196 = scmp.ne.s32.totalorder %s185, %s186
      %p197 = scmp.eq.s32.totalorder %s25, 0
      %p198 = por %p196, %p197
      %p199 = scmp.ne.s32.totalorder %s185, %s186
      %p200 = scmp.eq.s32.totalorder %s26, 1
      %p201 = por %p199, %p200
      %p203 = scmp.ne.s32.totalorder %s186, %s202
      %p204 = scmp.eq.s32.totalorder %s26, 0
      %p205 = por %p203, %p204
      %p206 = scmp.le.s32.totalorder 1, %s20
      %p207 = scmp.lt.s32.totalorder %s20, 3
      %p208 = pnand %p206, %p207
      %p209 = pneg %p208
      // Predicated region
      $region9: #{tpu_custom_call.1} parent=5 // pred_check
        _
      $region10: #{tpu_custom_call.1} parent=5 // pred_check_branch
        %211 = sbr.rel (%p208) target = $region12
      $region11: #{tpu_custom_call.1} parent=5 // pred_region
        %s212 = ssub.s32 %s20, 1
        // Predicated region
        $region13: #{tpu_custom_call.1} parent=11 // pred_check
          %p213 = pneg %p67
        $region14: #{tpu_custom_call.1} parent=11 // pred_check_branch
          %215 = sbr.rel (%p213) target = $region16
        $region15: #{tpu_custom_call.1} parent=11 // pred_region
          %s217 = ssub.s32 256, 256
          %218 = vsyncadd [#allocation6], %s217
          %s219 = sshll.u32 [#allocation5], 4
          %s220 = int_to_ptr.vmem [resolvable:$true] %s219
          %225 = dma.hbm_to_vmem [thread:$0]  %s1, 256, %s220, [#allocation6], 64, 64, 4
        $region16: #{tpu_custom_call.1} parent=11 // pred_fallthru
          _
        // Predicated region
        $region17: #{tpu_custom_call.1} parent=11 // pred_check
          %p226 = pneg %p88
        $region18: #{tpu_custom_call.1} parent=11 // pred_check_branch
          %228 = sbr.rel (%p226) target = $region20
        $region19: #{tpu_custom_call.1} parent=11 // pred_region
          _
        $region20: #{tpu_custom_call.1} parent=11 // pred_fallthru
          _
        // Predicated region
        $region21: #{tpu_custom_call.1} parent=11 // pred_check
          %p229 = pneg %p109
        $region22: #{tpu_custom_call.1} parent=11 // pred_check_branch
          %231 = sbr.rel (%p229) target = $region24
        $region23: #{tpu_custom_call.1} parent=11 // pred_region
          %s233 = ssub.s32 256, 256
          %234 = vsyncadd [#allocation6], %s233
          %s235 = sshll.u32 [#allocation7], 4
          %s236 = int_to_ptr.vmem [resolvable:$true] %s235
          %241 = dma.hbm_to_vmem [thread:$0]  %s3, 256, %s236, [#allocation6], 64, 64, 4
        $region24: #{tpu_custom_call.1} parent=11 // pred_fallthru
          _
        // Predicated region
        $region25: #{tpu_custom_call.1} parent=11 // pred_check
          %p242 = pneg %p130
        $region26: #{tpu_custom_call.1} parent=11 // pred_check_branch
          %244 = sbr.rel (%p242) target = $region28
        $region27: #{tpu_custom_call.1} parent=11 // pred_region
          _
        $region28: #{tpu_custom_call.1} parent=11 // pred_fallthru
          _
        // Predicated region
        $region29: #{tpu_custom_call.1} parent=11 // pred_check
          %p245 = pneg %p151
        $region30: #{tpu_custom_call.1} parent=11 // pred_check_branch
          %247 = sbr.rel (%p245) target = $region32
        $region31: #{tpu_custom_call.1} parent=11 // pred_region
          _
        $region32: #{tpu_custom_call.1} parent=11 // pred_fallthru
          _
        // Predicated region
        $region33: #{tpu_custom_call.1} parent=11 // pred_check
          %p248 = pneg %p172
        $region34: #{tpu_custom_call.1} parent=11 // pred_check_branch
          %250 = sbr.rel (%p248) target = $region36
        $region35: #{tpu_custom_call.1} parent=11 // pred_region
          _
        $region36: #{tpu_custom_call.1} parent=11 // pred_fallthru
          _
      $region12: #{tpu_custom_call.1} parent=5 // pred_fallthru
        _
      %p251 = scmp.lt.s32.totalorder %s20, 2
      // Predicated region
      $region37: #{tpu_custom_call.1} parent=5 // pred_check
        %p252 = pneg %p251
      $region38: #{tpu_custom_call.1} parent=5 // pred_check_branch
        %254 = sbr.rel (%p252) target = $region40
      $region39: #{tpu_custom_call.1} parent=5 // pred_region
        // Predicated region
        $region41: #{tpu_custom_call.1} parent=39 // pred_check
          %p255 = pneg %p40
        $region42: #{tpu_custom_call.1} parent=39 // pred_check_branch
          %257 = sbr.rel (%p255) target = $region44
        $region43: #{tpu_custom_call.1} parent=39 // pred_region
          %s258 = sand.u32 %s30, 1
          %s259 = scalar_lea.sflag [#allocation3], %s258
          %s260 = sand.u32 %s30, 1
          %s261 = smul.addr %s260, 8
          %s262 = scalar_lea.vmem [#allocation2], %s261
          %s264 = ssub.s32 128, 128
          %265 = vsyncadd %s259, %s264
          %s266 = smul.addr %s20, 128
          %s267 = scalar_lea.hbm %s0, %s266
          %s269 = sshll.u32 %s262, 4
          %s270 = int_to_ptr.vmem [resolvable:$true] %s269
          %272 = dma.hbm_to_vmem [thread:$0]  %s267, 128, %s270, %s259
        $region44: #{tpu_custom_call.1} parent=39 // pred_fallthru
          _
      $region40: #{tpu_custom_call.1} parent=5 // pred_fallthru
        _
      %p273 = scmp.le.s32.totalorder 1, %s20
      %p274 = scmp.lt.s32.totalorder %s20, 3
      %p275 = pnand %p273, %p274
      %p276 = pneg %p275
      // Predicated region
      $region45: #{tpu_custom_call.1} parent=5 // pred_check
        _
      $region46: #{tpu_custom_call.1} parent=5 // pred_check_branch
        %278 = sbr.rel (%p275) target = $region48
      $region47: #{tpu_custom_call.1} parent=5 // pred_region
        %s279 = ssub.s32 %s20, 1
        %s280 = sand.u32 %s33, 1
        %s281 = scalar_lea.sflag [#allocation3], %s280
        %s282 = sand.u32 %s33, 1
        %s283 = smul.addr %s282, 8
        %s284 = scalar_lea.vmem [#allocation2], %s283
        // Predicated region
        $region49: #{tpu_custom_call.1} parent=47 // pred_check
          %p285 = pneg %p46
        $region50: #{tpu_custom_call.1} parent=47 // pred_check_branch
          %287 = sbr.rel (%p285) target = $region52
        $region51: #{tpu_custom_call.1} parent=47 // pred_region
          %288 = dma.done %s281, 128
        $region52: #{tpu_custom_call.1} parent=47 // pred_fallthru
          _
        // Predicated region
        $region53: #{tpu_custom_call.1} parent=47 // pred_check
          %p289 = pneg %p67
        $region54: #{tpu_custom_call.1} parent=47 // pred_check_branch
          %291 = sbr.rel (%p289) target = $region56
        $region55: #{tpu_custom_call.1} parent=47 // pred_region
          %292 = dma.done [#allocation6], 256
        $region56: #{tpu_custom_call.1} parent=47 // pred_fallthru
          _
        // Predicated region
        $region57: #{tpu_custom_call.1} parent=47 // pred_check
          %p293 = pneg %p109
        $region58: #{tpu_custom_call.1} parent=47 // pred_check_branch
          %295 = sbr.rel (%p293) target = $region60
        $region59: #{tpu_custom_call.1} parent=47 // pred_region
          %296 = dma.done [#allocation6], 256
        $region60: #{tpu_custom_call.1} parent=47 // pred_fallthru
          _
        %s297 = sand.u32 %s33, 1
        %s298 = scalar_lea.sflag [#allocation3], %s297
        %s299 = sand.u32 %s33, 1
        %s300 = smul.addr %s299, 8
        %s301 = scalar_lea.vmem [#allocation2], %s300
        %p302 = pneg %p46
        %p303 = pneg %p43
        %p304 = pneg %p67
        %p305 = pneg %p64
        %p306 = pneg %p88
        %p307 = pneg %p85
        %p308 = pneg %p109
        %p309 = pneg %p106
        %p310 = pneg %p130
        %p311 = pneg %p127
        %p312 = pneg %p151
        %p313 = pneg %p148
        %p314 = pneg %p172
        %p315 = pneg %p169
        %p316 = pneg %p198
        %p317 = pneg %p195
        %s318 = sand.u32 %s185, 1
        %s319 = scalar_lea.sflag [#allocation4], %s318
        %s320 = sand.u32 %s185, 1
        %s321 = smul.addr %s320, 8
        %s322 = scalar_lea.vmem [#allocation8], %s321
        %v324 = vld [vmem:[%s284] sm:$0xff]
        %v325 = vld [vmem:[#allocation5] sm:$0xf]
        %v326 = vld [vmem:[#allocation5 + $0x4] sm:$0xf]
        %v327 = vld [vmem:[#allocation5 + $0x8] sm:$0xf]
        %v328 = vld [vmem:[#allocation5 + $0xc] sm:$0xf]
        %v329 = vld [vmem:[%s2] sm:$0x1]
        %v330 = vpack.c.bf16 %v324, %v324
        %v332 = vlaneseq
        %v333 = vshrl.u32 %v332, 7
        %v334 = vsub.s32 0, %v333
        %v335 = vrot.slane %v329, %v334
        %v341 = vunpack.c.l.b16 %v325
        %v342 = vunpack.c.l.b16 %v326
        %v343 = vunpack.c.l.b16 %v327
        %v344 = vunpack.c.l.b16 %v328
        %v345 = vpack.c.b16 %v342, %v341
        %v346 = vpack.c.b16 %v344, %v343
        %vm349 = vcmask 261120
        %v351 = vsel %vm349, %v330, 0
        %353 = vmatprep.subr.bf16.mxu0 0
        %354 = vmatpush1.bf16.msra.mxu0 0
        %355 = vmatprep.subr.bf16.mxu0 0
        %356 = vmatpush1.bf16.msra.mxu0 0
        %357 = vmatprep.subr.bf16.mxu0 0
        %358 = vmatpush1.bf16.msra.mxu0 0
        %359 = vmatprep.subr.bf16.mxu0 0
        %360 = vmatpush1.bf16.msra.mxu0 0
        %361 = vmatprep.subr.bf16.mxu0 0
        %362 = vmatpush1.bf16.msra.mxu0 0
        %363 = vmatprep.subr.bf16.mxu0 0
        %364 = vmatpush1.bf16.msra.mxu0 0
        %365 = vmatprep.subr.bf16.mxu0 0
        %366 = vmatpush1.bf16.msra.mxu0 %v346
        %367 = vmatprep.subr.bf16.mxu0 0
        %368 = vmatpush1.bf16.msra.mxu0 %v345
        %369 = vmatprep.subr.bf16.mxu0 0
        %370 = vmatpush2.bf16.msra.mxu0 0
        %371 = vmatprep.subr.bf16.mxu0 0
        %372 = vmatpush2.bf16.msra.mxu0 0
        %373 = vmatprep.subr.bf16.mxu0 0
        %374 = vmatpush2.bf16.msra.mxu0 0
        %375 = vmatprep.subr.bf16.mxu0 0
        %376 = vmatpush2.bf16.msra.mxu0 0
        %377 = vmatprep.subr.bf16.mxu0 0
        %378 = vmatpush2.bf16.msra.mxu0 0
        %379 = vmatprep.subr.bf16.mxu0 0
        %380 = vmatpush2.bf16.msra.mxu0 0
        %381 = vmatprep.subr.bf16.mxu0 0
        %382 = vmatpush2.bf16.msra.mxu0 0
        %383 = vmatprep.subr.bf16.mxu0 0
        %384 = vmatpush2.bf16.msra.mxu0 0
        %385 = vmatprep.mubr.bf16.mxu0 0
        %386 = vmatmul.mubr.bf16.gmra.mxu0 %v351
        %v387 = vpop.f32.mrf.mxu0
        %v388 = vadd.f32 %v335, %v387
        %v389 = vpop.f32.mrf.mxu0
        %v390 = vpop.f32.mrf.mxu0
        %v391 = vpop.f32.mrf.mxu0
        %392 = vdwg.mxu0
        %v393 = vmul.f32 %v388, 0.35355338
        %v394 = vpack.c.bf16 %v393, %v393
        %v395 = vpack.c.bf16 %v388, %v388
        %397 = vrot.lane.b32.xlu0 %v395, 96
        %v398 = vpop.permute.xlu0 %397
        %vm399 = vcmask 64512
        %v401 = vsel %vm399, %v394, 0
        %v404 = vsel %vm399, %v398, 0
        %406 = vmatprep.subr.bf16.mxu0 0
        %407 = vmatpush1.bf16.xpose.msra.mxu0 0
        %408 = vmatprep.subr.bf16.mxu0 0
        %409 = vmatpush1.bf16.xpose.msra.mxu0 0
        %410 = vmatprep.subr.bf16.mxu0 0
        %411 = vmatpush1.bf16.xpose.msra.mxu0 0
        %412 = vmatprep.subr.bf16.mxu0 0
        %413 = vmatpush1.bf16.xpose.msra.mxu0 0
        %414 = vmatprep.subr.bf16.mxu0 0
        %415 = vmatpush1.bf16.xpose.msra.mxu0 0
        %416 = vmatprep.subr.bf16.mxu0 0
        %417 = vmatpush1.bf16.xpose.msra.mxu0 0
        %418 = vmatprep.subr.bf16.mxu0 0
        %419 = vmatpush1.bf16.xpose.msra.mxu0 0
        %420 = vmatprep.subr.bf16.mxu0 0
        %421 = vmatpush1.bf16.xpose.msra.mxu0 %v404
        %422 = vmatprep.subr.bf16.mxu0 0
        %423 = vmatpush2.bf16.xpose.msra.mxu0 0
        %424 = vmatprep.subr.bf16.mxu0 0
        %425 = vmatpush2.bf16.xpose.msra.mxu0 0
        %426 = vmatprep.subr.bf16.mxu0 0
        %427 = vmatpush2.bf16.xpose.msra.mxu0 0
        %428 = vmatprep.subr.bf16.mxu0 0
        %429 = vmatpush2.bf16.xpose.msra.mxu0 0
        %430 = vmatprep.subr.bf16.mxu0 0
        %431 = vmatpush2.bf16.xpose.msra.mxu0 0
        %432 = vmatprep.subr.bf16.mxu0 0
        %433 = vmatpush2.bf16.xpose.msra.mxu0 0
        %434 = vmatprep.subr.bf16.mxu0 0
        %435 = vmatpush2.bf16.xpose.msra.mxu0 0
        %436 = vmatprep.subr.bf16.mxu0 0
        %437 = vmatpush2.bf16.xpose.msra.mxu0 0
        %438 = vmatprep.mubr.bf16.mxu0 0
        %439 = vmatmul.mubr.bf16.gmra.mxu0 %v401
        %v440 = vpop.f32.mrf.mxu0
        %v441 = vadd.f32 0.0, %v440
        %v442 = vpop.f32.mrf.mxu0
        %v443 = vpop.f32.mrf.mxu0
        %v444 = vpop.f32.mrf.mxu0
        %445 = vdwg.mxu0
        %v446 = vsel %vm399, %v441, -inf
        %447 = vmax.xlane.f32.xlu0 %v446
        %v448 = vpop.xlane.xlu0 %447
        %v449 = vsub.f32 %v441, %v448
        %v450 = vmul.f32 %v449, 1.442695
        %v451 = vpow.pop %v450
        %v452 = vsel %vm399, %v451, 0.0
        %453 = vadd.xlane.f32.xlu0 %v452
        %v454 = vpop.xlane.xlu0 %453
        %v455 = vrcp.pop %v454
        %v456 = vmul.f32 %v451, %v455
        %v457 = vpack.c.bf16 %v456, %v456
        %458 = vrot.lane.b32.xlu0 %v395, 64
        %v459 = vpop.permute.xlu0 %458
        %v461 = vsel %vm399, %v457, 0
        %vm463 = vcmask 1043456
        %v465 = vsel %vm463, %v459, 0
        %467 = vmatprep.subr.bf16.mxu0 0
        %468 = vmatpush1.bf16.msra.mxu0 0
        %469 = vmatprep.subr.bf16.mxu0 0
        %470 = vmatpush1.bf16.msra.mxu0 0
        %471 = vmatprep.subr.bf16.mxu0 0
        %472 = vmatpush1.bf16.msra.mxu0 0
        %473 = vmatprep.subr.bf16.mxu0 0
        %474 = vmatpush1.bf16.msra.mxu0 0
        %475 = vmatprep.subr.bf16.mxu0 0
        %476 = vmatpush1.bf16.msra.mxu0 0
        %477 = vmatprep.subr.bf16.mxu0 0
        %478 = vmatpush1.bf16.msra.mxu0 0
        %479 = vmatprep.subr.bf16.mxu0 0
        %480 = vmatpush1.bf16.msra.mxu0 0
        %481 = vmatprep.subr.bf16.mxu0 0
        %482 = vmatpush1.bf16.msra.mxu0 %v465
        %483 = vmatprep.subr.bf16.mxu0 0
        %484 = vmatpush2.bf16.msra.mxu0 0
        %485 = vmatprep.subr.bf16.mxu0 0
        %486 = vmatpush2.bf16.msra.mxu0 0
        %487 = vmatprep.subr.bf16.mxu0 0
        %488 = vmatpush2.bf16.msra.mxu0 0
        %489 = vmatprep.subr.bf16.mxu0 0
        %490 = vmatpush2.bf16.msra.mxu0 0
        %491 = vmatprep.subr.bf16.mxu0 0
        %492 = vmatpush2.bf16.msra.mxu0 0
        %493 = vmatprep.subr.bf16.mxu0 0
        %494 = vmatpush2.bf16.msra.mxu0 0
        %495 = vmatprep.subr.bf16.mxu0 0
        %496 = vmatpush2.bf16.msra.mxu0 0
        %497 = vmatprep.subr.bf16.mxu0 0
        %498 = vmatpush2.bf16.msra.mxu0 0
        %499 = vmatprep.mubr.bf16.mxu0 0
        %500 = vmatmul.mubr.bf16.gmra.mxu0 %v461
        %v501 = vpop.f32.mrf.mxu0
        %v502 = vadd.f32 0.0, %v501
        %v503 = vpop.f32.mrf.mxu0
        %v504 = vpop.f32.mrf.mxu0
        %v505 = vpop.f32.mrf.mxu0
        %506 = vdwg.mxu0
        %508 = vrot.lane.b32.xlu0 %v394, 120
        %v509 = vpop.permute.xlu0 %508
        %510 = vrot.lane.b32.xlu0 %v395, 88
        %v511 = vpop.permute.xlu0 %510
        %v513 = vsel %vm399, %v509, 0
        %v516 = vsel %vm399, %v511, 0
        %518 = vmatprep.subr.bf16.mxu0 0
        %519 = vmatpush1.bf16.xpose.msra.mxu0 0
        %520 = vmatprep.subr.bf16.mxu0 0
        %521 = vmatpush1.bf16.xpose.msra.mxu0 0
        %522 = vmatprep.subr.bf16.mxu0 0
        %523 = vmatpush1.bf16.xpose.msra.mxu0 0
        %524 = vmatprep.subr.bf16.mxu0 0
        %525 = vmatpush1.bf16.xpose.msra.mxu0 0
        %526 = vmatprep.subr.bf16.mxu0 0
        %527 = vmatpush1.bf16.xpose.msra.mxu0 0
        %528 = vmatprep.subr.bf16.mxu0 0
        %529 = vmatpush1.bf16.xpose.msra.mxu0 0
        %530 = vmatprep.subr.bf16.mxu0 0
        %531 = vmatpush1.bf16.xpose.msra.mxu0 0
        %532 = vmatprep.subr.bf16.mxu0 0
        %533 = vmatpush1.bf16.xpose.msra.mxu0 %v516
        %534 = vmatprep.subr.bf16.mxu0 0
        %535 = vmatpush2.bf16.xpose.msra.mxu0 0
        %536 = vmatprep.subr.bf16.mxu0 0
        %537 = vmatpush2.bf16.xpose.msra.mxu0 0
        %538 = vmatprep.subr.bf16.mxu0 0
        %539 = vmatpush2.bf16.xpose.msra.mxu0 0
        %540 = vmatprep.subr.bf16.mxu0 0
        %541 = vmatpush2.bf16.xpose.msra.mxu0 0
        %542 = vmatprep.subr.bf16.mxu0 0
        %543 = vmatpush2.bf16.xpose.msra.mxu0 0
        %544 = vmatprep.subr.bf16.mxu0 0
        %545 = vmatpush2.bf16.xpose.msra.mxu0 0
        %546 = vmatprep.subr.bf16.mxu0 0
        %547 = vmatpush2.bf16.xpose.msra.mxu0 0
        %548 = vmatprep.subr.bf16.mxu0 0
        %549 = vmatpush2.bf16.xpose.msra.mxu0 0
        %550 = vmatprep.mubr.bf16.mxu0 0
        %551 = vmatmul.mubr.bf16.gmra.mxu0 %v513
        %v552 = vpop.f32.mrf.mxu0
        %v553 = vadd.f32 0.0, %v552
        %v554 = vpop.f32.mrf.mxu0
        %v555 = vpop.f32.mrf.mxu0
        %v556 = vpop.f32.mrf.mxu0
        %557 = vdwg.mxu0
        %v558 = vsel %vm399, %v553, -inf
        %559 = vmax.xlane.f32.xlu0 %v558
        %v560 = vpop.xlane.xlu0 %559
        %v561 = vsub.f32 %v553, %v560
        %v562 = vmul.f32 %v561, 1.442695
        %v563 = vpow.pop %v562
        %v564 = vsel %vm399, %v563, 0.0
        %565 = vadd.xlane.f32.xlu0 %v564
        %v566 = vpop.xlane.xlu0 %565
        %v567 = vrcp.pop %v566
        %v568 = vmul.f32 %v563, %v567
        %v569 = vpack.c.bf16 %v568, %v568
        %570 = vrot.lane.b32.xlu0 %v395, 56
        %v571 = vpop.permute.xlu0 %570
        %v573 = vsel %vm399, %v569, 0
        %v576 = vsel %vm463, %v571, 0
        %578 = vmatprep.subr.bf16.mxu0 0
        %579 = vmatpush1.bf16.msra.mxu0 0
        %580 = vmatprep.subr.bf16.mxu0 0
        %581 = vmatpush1.bf16.msra.mxu0 0
        %582 = vmatprep.subr.bf16.mxu0 0
        %583 = vmatpush1.bf16.msra.mxu0 0
        %584 = vmatprep.subr.bf16.mxu0 0
        %585 = vmatpush1.bf16.msra.mxu0 0
        %586 = vmatprep.subr.bf16.mxu0 0
        %587 = vmatpush1.bf16.msra.mxu0 0
        %588 = vmatprep.subr.bf16.mxu0 0
        %589 = vmatpush1.bf16.msra.mxu0 0
        %590 = vmatprep.subr.bf16.mxu0 0
        %591 = vmatpush1.bf16.msra.mxu0 0
        %592 = vmatprep.subr.bf16.mxu0 0
        %593 = vmatpush1.bf16.msra.mxu0 %v576
        %594 = vmatprep.subr.bf16.mxu0 0
        %595 = vmatpush2.bf16.msra.mxu0 0
        %596 = vmatprep.subr.bf16.mxu0 0
        %597 = vmatpush2.bf16.msra.mxu0 0
        %598 = vmatprep.subr.bf16.mxu0 0
        %599 = vmatpush2.bf16.msra.mxu0 0
        %600 = vmatprep.subr.bf16.mxu0 0
        %601 = vmatpush2.bf16.msra.mxu0 0
        %602 = vmatprep.subr.bf16.mxu0 0
        %603 = vmatpush2.bf16.msra.mxu0 0
        %604 = vmatprep.subr.bf16.mxu0 0
        %605 = vmatpush2.bf16.msra.mxu0 0
        %606 = vmatprep.subr.bf16.mxu0 0
        %607 = vmatpush2.bf16.msra.mxu0 0
        %608 = vmatprep.subr.bf16.mxu0 0
        %609 = vmatpush2.bf16.msra.mxu0 0
        %610 = vmatprep.mubr.bf16.mxu0 0
        %611 = vmatmul.mubr.bf16.gmra.mxu0 %v573
        %v612 = vpop.f32.mrf.mxu0
        %v613 = vadd.f32 0.0, %v612
        %v614 = vpop.f32.mrf.mxu0
        %v615 = vpop.f32.mrf.mxu0
        %v616 = vpop.f32.mrf.mxu0
        %617 = vdwg.mxu0
        %618 = vrot.lane.b32.xlu0 %v394, 112
        %v619 = vpop.permute.xlu0 %618
        %620 = vrot.lane.b32.xlu0 %v395, 80
        %v621 = vpop.permute.xlu0 %620
        %v623 = vsel %vm399, %v619, 0
        %v626 = vsel %vm399, %v621, 0
        %628 = vmatprep.subr.bf16.mxu0 0
        %629 = vmatpush1.bf16.xpose.msra.mxu0 0
        %630 = vmatprep.subr.bf16.mxu0 0
        %631 = vmatpush1.bf16.xpose.msra.mxu0 0
        %632 = vmatprep.subr.bf16.mxu0 0
        %633 = vmatpush1.bf16.xpose.msra.mxu0 0
        %634 = vmatprep.subr.bf16.mxu0 0
        %635 = vmatpush1.bf16.xpose.msra.mxu0 0
        %636 = vmatprep.subr.bf16.mxu0 0
        %637 = vmatpush1.bf16.xpose.msra.mxu0 0
        %638 = vmatprep.subr.bf16.mxu0 0
        %639 = vmatpush1.bf16.xpose.msra.mxu0 0
        %640 = vmatprep.subr.bf16.mxu0 0
        %641 = vmatpush1.bf16.xpose.msra.mxu0 0
        %642 = vmatprep.subr.bf16.mxu0 0
        %643 = vmatpush1.bf16.xpose.msra.mxu0 %v626
        %644 = vmatprep.subr.bf16.mxu0 0
        %645 = vmatpush2.bf16.xpose.msra.mxu0 0
        %646 = vmatprep.subr.bf16.mxu0 0
        %647 = vmatpush2.bf16.xpose.msra.mxu0 0
        %648 = vmatprep.subr.bf16.mxu0 0
        %649 = vmatpush2.bf16.xpose.msra.mxu0 0
        %650 = vmatprep.subr.bf16.mxu0 0
        %651 = vmatpush2.bf16.xpose.msra.mxu0 0
        %652 = vmatprep.subr.bf16.mxu0 0
        %653 = vmatpush2.bf16.xpose.msra.mxu0 0
        %654 = vmatprep.subr.bf16.mxu0 0
        %655 = vmatpush2.bf16.xpose.msra.mxu0 0
        %656 = vmatprep.subr.bf16.mxu0 0
        %657 = vmatpush2.bf16.xpose.msra.mxu0 0
        %658 = vmatprep.subr.bf16.mxu0 0
        %659 = vmatpush2.bf16.xpose.msra.mxu0 0
        %660 = vmatprep.mubr.bf16.mxu0 0
        %661 = vmatmul.mubr.bf16.gmra.mxu0 %v623
        %v662 = vpop.f32.mrf.mxu0
        %v663 = vadd.f32 0.0, %v662
        %v664 = vpop.f32.mrf.mxu0
        %v665 = vpop.f32.mrf.mxu0
        %v666 = vpop.f32.mrf.mxu0
        %667 = vdwg.mxu0
        %v668 = vsel %vm399, %v663, -inf
        %669 = vmax.xlane.f32.xlu0 %v668
        %v670 = vpop.xlane.xlu0 %669
        %v671 = vsub.f32 %v663, %v670
        %v672 = vmul.f32 %v671, 1.442695
        %v673 = vpow.pop %v672
        %v674 = vsel %vm399, %v673, 0.0
        %675 = vadd.xlane.f32.xlu0 %v674
        %v676 = vpop.xlane.xlu0 %675
        %v677 = vrcp.pop %v676
        %v678 = vmul.f32 %v673, %v677
        %v679 = vpack.c.bf16 %v678, %v678
        %680 = vrot.lane.b32.xlu0 %v395, 48
        %v681 = vpop.permute.xlu0 %680
        %v683 = vsel %vm399, %v679, 0
        %v686 = vsel %vm463, %v681, 0
        %688 = vmatprep.subr.bf16.mxu0 0
        %689 = vmatpush1.bf16.msra.mxu0 0
        %690 = vmatprep.subr.bf16.mxu0 0
        %691 = vmatpush1.bf16.msra.mxu0 0
        %692 = vmatprep.subr.bf16.mxu0 0
        %693 = vmatpush1.bf16.msra.mxu0 0
        %694 = vmatprep.subr.bf16.mxu0 0
        %695 = vmatpush1.bf16.msra.mxu0 0
        %696 = vmatprep.subr.bf16.mxu0 0
        %697 = vmatpush1.bf16.msra.mxu0 0
        %698 = vmatprep.subr.bf16.mxu0 0
        %699 = vmatpush1.bf16.msra.mxu0 0
        %700 = vmatprep.subr.bf16.mxu0 0
        %701 = vmatpush1.bf16.msra.mxu0 0
        %702 = vmatprep.subr.bf16.mxu0 0
        %703 = vmatpush1.bf16.msra.mxu0 %v686
        %704 = vmatprep.subr.bf16.mxu0 0
        %705 = vmatpush2.bf16.msra.mxu0 0
        %706 = vmatprep.subr.bf16.mxu0 0
        %707 = vmatpush2.bf16.msra.mxu0 0
        %708 = vmatprep.subr.bf16.mxu0 0
        %709 = vmatpush2.bf16.msra.mxu0 0
        %710 = vmatprep.subr.bf16.mxu0 0
        %711 = vmatpush2.bf16.msra.mxu0 0
        %712 = vmatprep.subr.bf16.mxu0 0
        %713 = vmatpush2.bf16.msra.mxu0 0
        %714 = vmatprep.subr.bf16.mxu0 0
        %715 = vmatpush2.bf16.msra.mxu0 0
        %716 = vmatprep.subr.bf16.mxu0 0
        %717 = vmatpush2.bf16.msra.mxu0 0
        %718 = vmatprep.subr.bf16.mxu0 0
        %719 = vmatpush2.bf16.msra.mxu0 0
        %720 = vmatprep.mubr.bf16.mxu0 0
        %721 = vmatmul.mubr.bf16.gmra.mxu0 %v683
        %v722 = vpop.f32.mrf.mxu0
        %v723 = vadd.f32 0.0, %v722
        %v724 = vpop.f32.mrf.mxu0
        %v725 = vpop.f32.mrf.mxu0
        %v726 = vpop.f32.mrf.mxu0
        %727 = vdwg.mxu0
        %728 = vrot.lane.b32.xlu0 %v394, 104
        %v729 = vpop.permute.xlu0 %728
        %730 = vrot.lane.b32.xlu0 %v395, 72
        %v731 = vpop.permute.xlu0 %730
        %v733 = vsel %vm399, %v729, 0
        %v736 = vsel %vm399, %v731, 0
        %738 = vmatprep.subr.bf16.mxu0 0
        %739 = vmatpush1.bf16.xpose.msra.mxu0 0
        %740 = vmatprep.subr.bf16.mxu0 0
        %741 = vmatpush1.bf16.xpose.msra.mxu0 0
        %742 = vmatprep.subr.bf16.mxu0 0
        %743 = vmatpush1.bf16.xpose.msra.mxu0 0
        %744 = vmatprep.subr.bf16.mxu0 0
        %745 = vmatpush1.bf16.xpose.msra.mxu0 0
        %746 = vmatprep.subr.bf16.mxu0 0
        %747 = vmatpush1.bf16.xpose.msra.mxu0 0
        %748 = vmatprep.subr.bf16.mxu0 0
        %749 = vmatpush1.bf16.xpose.msra.mxu0 0
        %750 = vmatprep.subr.bf16.mxu0 0
        %751 = vmatpush1.bf16.xpose.msra.mxu0 0
        %752 = vmatprep.subr.bf16.mxu0 0
        %753 = vmatpush1.bf16.xpose.msra.mxu0 %v736
        %754 = vmatprep.subr.bf16.mxu0 0
        %755 = vmatpush2.bf16.xpose.msra.mxu0 0
        %756 = vmatprep.subr.bf16.mxu0 0
        %757 = vmatpush2.bf16.xpose.msra.mxu0 0
        %758 = vmatprep.subr.bf16.mxu0 0
        %759 = vmatpush2.bf16.xpose.msra.mxu0 0
        %760 = vmatprep.subr.bf16.mxu0 0
        %761 = vmatpush2.bf16.xpose.msra.mxu0 0
        %762 = vmatprep.subr.bf16.mxu0 0
        %763 = vmatpush2.bf16.xpose.msra.mxu0 0
        %764 = vmatprep.subr.bf16.mxu0 0
        %765 = vmatpush2.bf16.xpose.msra.mxu0 0
        %766 = vmatprep.subr.bf16.mxu0 0
        %767 = vmatpush2.bf16.xpose.msra.mxu0 0
        %768 = vmatprep.subr.bf16.mxu0 0
        %769 = vmatpush2.bf16.xpose.msra.mxu0 0
        %770 = vmatprep.mubr.bf16.mxu0 0
        %771 = vmatmul.mubr.bf16.gmra.mxu0 %v733
        %v772 = vpop.f32.mrf.mxu0
        %v773 = vadd.f32 0.0, %v772
        %v774 = vpop.f32.mrf.mxu0
        %v775 = vpop.f32.mrf.mxu0
        %v776 = vpop.f32.mrf.mxu0
        %777 = vdwg.mxu0
        %v778 = vsel %vm399, %v773, -inf
        %779 = vmax.xlane.f32.xlu0 %v778
        %v780 = vpop.xlane.xlu0 %779
        %v781 = vsub.f32 %v773, %v780
        %v782 = vmul.f32 %v781, 1.442695
        %v783 = vpow.pop %v782
        %v784 = vsel %vm399, %v783, 0.0
        %785 = vadd.xlane.f32.xlu0 %v784
        %v786 = vpop.xlane.xlu0 %785
        %v787 = vrcp.pop %v786
        %v788 = vmul.f32 %v783, %v787
        %v789 = vpack.c.bf16 %v788, %v788
        %790 = vrot.lane.b32.xlu0 %v395, 40
        %v791 = vpop.permute.xlu0 %790
        %v793 = vsel %vm399, %v789, 0
        %v796 = vsel %vm463, %v791, 0
        %798 = vmatprep.subr.bf16.mxu0 0
        %799 = vmatpush1.bf16.msra.mxu0 0
        %800 = vmatprep.subr.bf16.mxu0 0
        %801 = vmatpush1.bf16.msra.mxu0 0
        %802 = vmatprep.subr.bf16.mxu0 0
        %803 = vmatpush1.bf16.msra.mxu0 0
        %804 = vmatprep.subr.bf16.mxu0 0
        %805 = vmatpush1.bf16.msra.mxu0 0
        %806 = vmatprep.subr.bf16.mxu0 0
        %807 = vmatpush1.bf16.msra.mxu0 0
        %808 = vmatprep.subr.bf16.mxu0 0
        %809 = vmatpush1.bf16.msra.mxu0 0
        %810 = vmatprep.subr.bf16.mxu0 0
        %811 = vmatpush1.bf16.msra.mxu0 0
        %812 = vmatprep.subr.bf16.mxu0 0
        %813 = vmatpush1.bf16.msra.mxu0 %v796
        %814 = vmatprep.subr.bf16.mxu0 0
        %815 = vmatpush2.bf16.msra.mxu0 0
        %816 = vmatprep.subr.bf16.mxu0 0
        %817 = vmatpush2.bf16.msra.mxu0 0
        %818 = vmatprep.subr.bf16.mxu0 0
        %819 = vmatpush2.bf16.msra.mxu0 0
        %820 = vmatprep.subr.bf16.mxu0 0
        %821 = vmatpush2.bf16.msra.mxu0 0
        %822 = vmatprep.subr.bf16.mxu0 0
        %823 = vmatpush2.bf16.msra.mxu0 0
        %824 = vmatprep.subr.bf16.mxu0 0
        %825 = vmatpush2.bf16.msra.mxu0 0
        %826 = vmatprep.subr.bf16.mxu0 0
        %827 = vmatpush2.bf16.msra.mxu0 0
        %828 = vmatprep.subr.bf16.mxu0 0
        %829 = vmatpush2.bf16.msra.mxu0 0
        %830 = vmatprep.mubr.bf16.mxu0 0
        %831 = vmatmul.mubr.bf16.gmra.mxu0 %v793
        %v832 = vpop.f32.mrf.mxu0
        %v833 = vadd.f32 0.0, %v832
        %v834 = vpop.f32.mrf.mxu0
        %v835 = vpop.f32.mrf.mxu0
        %v836 = vpop.f32.mrf.mxu0
        %837 = vdwg.mxu0
        %839 = vrot.lane.b32.xlu0 %v613, 8
        %v840 = vpop.permute.xlu0 %839
        %843 = vrot.lane.b32.xlu0 %v723, 16
        %v844 = vpop.permute.xlu0 %843
        %847 = vrot.lane.b32.xlu0 %v833, 24
        %v848 = vpop.permute.xlu0 %847
        %v850 = vsel %vm399, %v502, %v840
        %vm851 = vcmask 130048
        %v852 = vsel %vm851, %v850, %v844
        %vm853 = vcmask 195584
        %v854 = vsel %vm853, %v852, %v848
        %v855 = vpack.c.bf16 %v854, %v854
        %v856 = vld [vmem:[#allocation7] sm:$0xf]
        %v857 = vld [vmem:[#allocation7 + $0x4] sm:$0xf]
        %v858 = vld [vmem:[#allocation7 + $0x8] sm:$0xf]
        %v859 = vld [vmem:[#allocation7 + $0xc] sm:$0xf]
        %v860 = vld [vmem:[%s4] sm:$0x1]
        %v862 = vlaneseq
        %v863 = vshrl.u32 %v862, 7
        %v864 = vsub.s32 0, %v863
        %v865 = vrot.slane %v860, %v864
        %v871 = vunpack.c.l.b16 %v856
        %v872 = vunpack.c.l.b16 %v857
        %v873 = vunpack.c.l.b16 %v858
        %v874 = vunpack.c.l.b16 %v859
        %v875 = vpack.c.b16 %v872, %v871
        %v876 = vpack.c.b16 %v874, %v873
        %v880 = vsel %vm349, %v855, 0
        %882 = vmatprep.subr.bf16.mxu0 0
        %883 = vmatpush1.bf16.msra.mxu0 0
        %884 = vmatprep.subr.bf16.mxu0 0
        %885 = vmatpush1.bf16.msra.mxu0 0
        %886 = vmatprep.subr.bf16.mxu0 0
        %887 = vmatpush1.bf16.msra.mxu0 0
        %888 = vmatprep.subr.bf16.mxu0 0
        %889 = vmatpush1.bf16.msra.mxu0 0
        %890 = vmatprep.subr.bf16.mxu0 0
        %891 = vmatpush1.bf16.msra.mxu0 0
        %892 = vmatprep.subr.bf16.mxu0 0
        %893 = vmatpush1.bf16.msra.mxu0 0
        %894 = vmatprep.subr.bf16.mxu0 0
        %895 = vmatpush1.bf16.msra.mxu0 %v876
        %896 = vmatprep.subr.bf16.mxu0 0
        %897 = vmatpush1.bf16.msra.mxu0 %v875
        %898 = vmatprep.subr.bf16.mxu0 0
        %899 = vmatpush2.bf16.msra.mxu0 0
        %900 = vmatprep.subr.bf16.mxu0 0
        %901 = vmatpush2.bf16.msra.mxu0 0
        %902 = vmatprep.subr.bf16.mxu0 0
        %903 = vmatpush2.bf16.msra.mxu0 0
        %904 = vmatprep.subr.bf16.mxu0 0
        %905 = vmatpush2.bf16.msra.mxu0 0
        %906 = vmatprep.subr.bf16.mxu0 0
        %907 = vmatpush2.bf16.msra.mxu0 0
        %908 = vmatprep.subr.bf16.mxu0 0
        %909 = vmatpush2.bf16.msra.mxu0 0
        %910 = vmatprep.subr.bf16.mxu0 0
        %911 = vmatpush2.bf16.msra.mxu0 0
        %912 = vmatprep.subr.bf16.mxu0 0
        %913 = vmatpush2.bf16.msra.mxu0 0
        %914 = vmatprep.mubr.bf16.mxu0 0
        %915 = vmatmul.mubr.bf16.gmra.mxu0 %v880
        %v916 = vpop.f32.mrf.mxu0
        %v917 = vadd.f32 %v865, %v916
        %v918 = vpop.f32.mrf.mxu0
        %v919 = vpop.f32.mrf.mxu0
        %v920 = vpop.f32.mrf.mxu0
        %921 = vdwg.mxu0
        %v922 = vadd.f32 %v324, %v917
        %v923 = vsel %vm349, %v922, 0.0
        %924 = vadd.xlane.f32.xlu0 %v923
        %v925 = vpop.xlane.xlu0 %924
        %v926 = vrcp.pop 32.0
        %v927 = vmul.f32 %v925, %v926
        %v928 = vsub.f32 %v922, %v927
        %v929 = vmul.f32 %v928, %v928
        %v930 = vsel %vm349, %v929, 0.0
        %931 = vadd.xlane.f32.xlu0 %v930
        %v932 = vpop.xlane.xlu0 %931
        %v933 = vmul.f32 %v932, %v926
        %v934 = vadd.f32 %v933, 1e-05
        %v935 = vrsqrt.pop %v934
        %v936 = vmul.f32 %v928, %v935
        %v937 = vld [vmem:[%s5] sm:$0x1]
        %v939 = vlaneseq
        %v940 = vshrl.u32 %v939, 7
        %v941 = vsub.s32 0, %v940
        %v942 = vrot.slane %v937, %v941
        %v944 = vmul.f32 %v936, %v942
        %v945 = vld [vmem:[%s6] sm:$0x1]
        %v947 = vlaneseq
        %v948 = vshrl.u32 %v947, 7
        %v949 = vsub.s32 0, %v948
        %v950 = vrot.slane %v945, %v949
        %v952 = vadd.f32 %v944, %v950
        %953 = vst.msk [vmem:[%s322] sm:$0xff] %vm349, %v952
        %s954 = sand.u32 %s185, 1
        %s955 = scalar_lea.sflag [#allocation4], %s954
        %s956 = sand.u32 %s185, 1
        %s957 = smul.addr %s956, 8
        %s958 = scalar_lea.vmem [#allocation8], %s957
        // Predicated region
        $region61: #{tpu_custom_call.1} parent=47 // pred_check
          %p959 = pneg %p195
        $region62: #{tpu_custom_call.1} parent=47 // pred_check_branch
          %961 = sbr.rel (%p959) target = $region64
        $region63: #{tpu_custom_call.1} parent=47 // pred_region
          %s963 = ssub.s32 128, 128
          %964 = vsyncadd %s955, %s963
          %s965 = smul.addr %s25, 128
          %s966 = scalar_lea.hbm %s7, %s965
          %s968 = sshll.u32 %s958, 4
          %s969 = int_to_ptr.vmem [resolvable:$true] %s968
          %971 = dma.vmem_to_hbm [thread:$0]  %s969, 128, %s966, %s955
        $region64: #{tpu_custom_call.1} parent=47 // pred_fallthru
          _
      $region48: #{tpu_custom_call.1} parent=5 // pred_fallthru
        _
      %p972 = scmp.le.s32.totalorder 2, %s20
      // Predicated region
      $region65: #{tpu_custom_call.1} parent=5 // pred_check
        %p973 = pneg %p972
      $region66: #{tpu_custom_call.1} parent=5 // pred_check_branch
        %975 = sbr.rel (%p973) target = $region68
      $region67: #{tpu_custom_call.1} parent=5 // pred_region
        %s976 = ssub.s32 %s20, 2
        // Predicated region
        $region69: #{tpu_custom_call.1} parent=67 // pred_check
          %p977 = pneg %p201
        $region70: #{tpu_custom_call.1} parent=67 // pred_check_branch
          %979 = sbr.rel (%p977) target = $region72
        $region71: #{tpu_custom_call.1} parent=67 // pred_region
          %s980 = sand.u32 %s186, 1
          %s981 = scalar_lea.sflag [#allocation4], %s980
          %s982 = sand.u32 %s186, 1
          %s983 = smul.addr %s982, 8
          %s984 = scalar_lea.vmem [#allocation8], %s983
          %985 = dma.done %s981, 128
        $region72: #{tpu_custom_call.1} parent=67 // pred_fallthru
          _
      $region68: #{tpu_custom_call.1} parent=5 // pred_fallthru
        _
    $region6: #{tpu_custom_call.1} parent=1 // loop_footer
      %s24 = sadd.s32 1, %s20
    $region7: #{tpu_custom_call.1} parent=1 // loop_footer_branch
      %19 = sbr.rel target = $region3
    $region8: #{tpu_custom_call.1} parent=1 // loop_exit
      _
    %986 = vsyncpa [#allocation3], 1
    %s987 = scalar_lea.sflag [#allocation3], 1
    %988 = vsyncpa %s987, 1
    %989 = vsyncpa [#allocation6], 1
    %990 = vsyncpa [#allocation4], 1
    %s991 = scalar_lea.sflag [#allocation4], 1
    %992 = vsyncpa %s991, 1

</llo_original>
